<compile_context>
chip_gen: v5e
topology: v5e:2x2
jax: 0.10.0
libtpu: 0.0.40
codegen_flags: <defaults>
</compile_context>

<pallas_src>
import jax
import jax.numpy as jnp
from jax import lax
from jax.experimental import pallas as pl
from jax.experimental.pallas import tpu as pltpu


def _make_kernel(L):
    two_l = 2 * L

    def kernel(x_ref, w_ref, b_ref, out_ref):
        x = x_ref[...]                              # (NB*Cin, L), lanes = L

        # Zero-interleave along lanes via a 0/1 spread matmul (no reshape):
        #   z[r, 2i+1] = x[r, i], z[r, 2i] = 0          z: (NB*Cin, 2L)
        row = lax.broadcasted_iota(jnp.int32, (L, two_l), 0)
        col = lax.broadcasted_iota(jnp.int32, (L, two_l), 1)
        spread = jnp.where(col == 2 * row + 1,
                           jnp.float32(1.0), jnp.float32(0.0)).astype(x.dtype)
        z = jnp.dot(x, spread, preferred_element_type=jnp.float32)

        # Circular taps of the interleaved signal via lane rolls (XLU slot).
        z_m1 = pltpu.roll(z, shift=1, axis=1)          # z[:, (j-1) % 2L]  -> w0
        z_p1 = pltpu.roll(z, shift=two_l - 1, axis=1)  # z[:, (j+1) % 2L]  -> w2
        zc = jnp.concatenate([z_m1, z, z_p1], axis=0)  # (3*NB*Cin, 2L)

        # One block-diagonal conv matmul over all NB batch items; emits the
        # final interleaved (NB*Cout, 2L) rows -> single unmasked lane-dense
        # store, no wrapper relayout pass.
        out = jnp.dot(w_ref[...], zc, preferred_element_type=jnp.float32)
        out = out + b_ref[...]                         # (NB*Cout, 1) bias column
        out_ref[...] = out.astype(out_ref.dtype)

    return kernel


def _pick_batch_block(n, cin, cout, cap=8):
    """Largest divisor of n (<= cap) keeping sublane-aligned blocks and,
    when possible, a grid of >= 2 parallel steps (two TensorCores on v7x).
    cap stays modest because the block-diagonal tap matrix grows as NB^2."""
    divisors = [d for d in range(1, n + 1) if n % d == 0]

    def aligned(d):
        return ((d * cin) % 8 == 0 and (d * cout) % 8 == 0) or d == n

    for pref in (
        lambda d: aligned(d) and d <= cap and n // d >= 2,
        lambda d: aligned(d) and d <= cap,
        lambda d: aligned(d),
    ):
        cands = [d for d in divisors if pref(d)]
        if cands:
            return max(cands)
    return n


def periodic_upsample_1d(x, weight, bias, *, batch_block=None):
    """x: (N, Cin, L), weight: (Cout, Cin, 3), bias: (Cout,) -> (N, Cout, 2L)."""
    N, Cin, L = x.shape
    Cout = weight.shape[0]
    nb = batch_block if batch_block is not None else _pick_batch_block(N, Cin, Cout)
    assert N % nb == 0

    # Free (metadata-only) reshapes: fold batch into the row/sublane dim so one
    # 2-D block covers nb batch items per grid step.
    x2 = x.reshape(N * Cin, L)

    # Block-diagonal tap matrix (nb*Cout, 3*nb*Cin): column blocks [w0 | w1 | w2],
    # each block-diagonal over the nb batch items (shared conv weights).
    eye_nb = jnp.eye(nb, dtype=x.dtype)
    w_big = jnp.concatenate(
        [jnp.kron(eye_nb, weight[:, :, t].astype(x.dtype)) for t in (0, 1, 2)],
        axis=1)
    b_col = jnp.tile(bias.astype(x.dtype), nb).reshape(nb * Cout, 1)

    grid = (N // nb,)
    itemsize = x.dtype.itemsize
    flops = (2 * N * Cin * L * 2 * L                                    # spread
             + 2 * (N // nb) * (nb * Cout) * (3 * nb * Cin) * 2 * L)    # conv
    bytes_accessed = (x2.size + N * Cout * 2 * L + w_big.size + b_col.size) * itemsize

    out = pl.pallas_call(
        _make_kernel(L),
        out_shape=jax.ShapeDtypeStruct((N * Cout, 2 * L), x.dtype),
        grid_spec=pltpu.PrefetchScalarGridSpec(
            num_scalar_prefetch=0,
            grid=grid,
            in_specs=[
                pl.BlockSpec((nb * Cin, L), lambda i: (i, 0)),
                pl.BlockSpec((nb * Cout, 3 * nb * Cin), lambda i: (0, 0)),
                pl.BlockSpec((nb * Cout, 1), lambda i: (0, 0)),
            ],
            out_specs=pl.BlockSpec((nb * Cout, 2 * L), lambda i: (i, 0)),
        ),
        compiler_params=pltpu.CompilerParams(
            dimension_semantics=("parallel",),
            vmem_limit_bytes=32 * 1024 * 1024),
        cost_estimate=pl.CostEstimate(
            flops=flops, transcendentals=0, bytes_accessed=bytes_accessed),
    )(x2, w_big, b_col)

    return out.reshape(N, Cout, 2 * L)


def _reference(x, weight, bias):
    """Pure-JAX transcription of the PyTorch forward pass (for verification)."""
    N, Cin, L = x.shape
    z = jnp.stack([jnp.zeros_like(x), x], axis=-1).reshape(N, Cin, 2 * L)
    z = jnp.concatenate([z[..., -1:], z, z[..., :1]], axis=-1)
    out = lax.conv_general_dilated(
        z, weight, window_strides=(1,), padding="VALID",
        dimension_numbers=("NCH", "OIH", "NCH"),
        precision=lax.Precision.HIGHEST)
    return out + bias[None, :, None]


if __name__ == "__main__":
    N, C_IN, C_OUT, L = 4, 4, 8, 128

    key = jax.random.PRNGKey(0)
    kx, kw, kb = jax.random.split(key, 3)
    x = jax.random.normal(kx, (N, C_IN, L), dtype=jnp.float32)
    # Deterministic synthetic Conv1d parameters (shapes match nn.Conv1d(in, out, 3)).
    weight = jax.random.normal(kw, (C_OUT, C_IN, 3), dtype=jnp.float32) * 0.1
    bias = jax.random.normal(kb, (C_OUT,), dtype=jnp.float32) * 0.1

    out = jax.block_until_ready(periodic_upsample_1d(x, weight, bias))
    ref = jax.block_until_ready(_reference(x, weight, bias))

    assert out.shape == (N, C_OUT, 2 * L), out.shape
    assert jnp.allclose(out, ref, atol=1e-4, rtol=1e-4), \
        f"max abs err {jnp.max(jnp.abs(out - ref))}"
    print("KERNEL_OK")
</pallas_src>

<mosaic_0001>
module attributes {stable_mosaic.version = 11 : i64} {
  func.func @kernel(%arg0: i32, %arg1: memref<8x128xf32, #tpu.memory_space<vmem>>, %arg2: memref<16x24xf32, #tpu.memory_space<vmem>>, %arg3: memref<16x1xf32, #tpu.memory_space<vmem>>, %arg4: memref<16x256xf32, #tpu.memory_space<vmem>>) attributes {dimension_semantics = [#tpu.dimension_semantics<parallel>], iteration_bounds = array<i64: 2>, scalar_prefetch = 0 : i64, scratch_operands = 0 : i64, tpu.core_type = #tpu.core_type<tc>, window_params = [{transform_indices = @transform_0, window_bounds = array<i64: 8, 128>}, {pipeline_mode = #tpu.pipeline_mode<synchronous>, transform_indices = @transform_1, window_bounds = array<i64: 16, 24>}, {pipeline_mode = #tpu.pipeline_mode<synchronous>, transform_indices = @transform_2, window_bounds = array<i64: 16, 1>}, {transform_indices = @transform_3, window_bounds = array<i64: 16, 256>}]} {
    %c0 = arith.constant 0 : index
    %c0_0 = arith.constant 0 : index
    %0 = vector.load %arg1[%c0, %c0_0] : memref<8x128xf32, #tpu.memory_space<vmem>>, vector<8x128xf32>
    %1 = tpu.iota {dimensions = array<i32: 0>} : vector<128x256xi32>
    %2 = tpu.iota {dimensions = array<i32: 1>} : vector<128x256xi32>
    %c2_i32 = arith.constant 2 : i32
    %3 = vector.broadcast %c2_i32 : i32 to vector<128x256xi32>
    %4 = arith.muli %3, %1 : vector<128x256xi32>
    %c1_i32 = arith.constant 1 : i32
    %5 = vector.broadcast %c1_i32 : i32 to vector<128x256xi32>
    %6 = arith.addi %4, %5 : vector<128x256xi32>
    %7 = arith.cmpi eq, %2, %6 : vector<128x256xi32>
    %cst = arith.constant 1.000000e+00 : f32
    %cst_1 = arith.constant 0.000000e+00 : f32
    %8 = vector.broadcast %cst : f32 to vector<128x256xf32>
    %9 = vector.broadcast %cst_1 : f32 to vector<128x256xf32>
    %10 = arith.select %7, %8, %9 : vector<128x256xi1>, vector<128x256xf32>
    %cst_2 = arith.constant dense<0.000000e+00> : vector<8x256xf32>
    %11 = tpu.matmul %0, %10, %cst_2 {dimension_numbers = #tpu.dot_dimension_numbers<[1], [0], [0], [1], [0, 0, 1, 1], [], []>} : vector<8x128xf32>, vector<128x256xf32>, vector<8x256xf32> -> vector<8x256xf32>
    %c1_i32_3 = arith.constant 1 : i32
    %12 = tpu.dynamic_rotate %11 by %c1_i32_3 dim 1 : vector<8x256xf32>, i32 -> vector<8x256xf32>
    %c255_i32 = arith.constant 255 : i32
    %13 = tpu.dynamic_rotate %11 by %c255_i32 dim 1 : vector<8x256xf32>, i32 -> vector<8x256xf32>
    %14 = tpu.concatenate %12, %11, %13 in 0 : vector<8x256xf32>, vector<8x256xf32>, vector<8x256xf32> -> vector<24x256xf32>
    %c0_4 = arith.constant 0 : index
    %c0_5 = arith.constant 0 : index
    %15 = vector.load %arg2[%c0_4, %c0_5] : memref<16x24xf32, #tpu.memory_space<vmem>>, vector<16x24xf32>
    %cst_6 = arith.constant dense<0.000000e+00> : vector<16x256xf32>
    %16 = tpu.matmul %15, %14, %cst_6 {dimension_numbers = #tpu.dot_dimension_numbers<[1], [0], [0], [1], [0, 0, 1, 1], [], []>} : vector<16x24xf32>, vector<24x256xf32>, vector<16x256xf32> -> vector<16x256xf32>
    %c0_7 = arith.constant 0 : index
    %c0_8 = arith.constant 0 : index
    %17 = vector.load %arg3[%c0_7, %c0_8] : memref<16x1xf32, #tpu.memory_space<vmem>>, vector<16x1xf32>
    %18 = vector.broadcast %17 : vector<16x1xf32> to vector<16x256xf32>
    %19 = arith.addf %16, %18 : vector<16x256xf32>
    %c0_9 = arith.constant 0 : index
    %c0_10 = arith.constant 0 : index
    %20 = vector.load %arg4[%c0_9, %c0_10] : memref<16x256xf32, #tpu.memory_space<vmem>>, vector<16x256xf32>
    tpu.vector_store %arg4[%c0_9, %c0_10], %19 {strides = array<i32>} : memref<16x256xf32, #tpu.memory_space<vmem>>, vector<16x256xf32>,
    return
  }
  func.func @transform_0(%arg0: i32) -> (i32, i32) {
    %c0_i32 = arith.constant 0 : i32
    %c0_i32_0 = arith.constant 0 : i32
    return %arg0, %c0_i32 : i32, i32
  }
  func.func @transform_1(%arg0: i32) -> (i32, i32) {
    %c0_i32 = arith.constant 0 : i32
    %c0_i32_0 = arith.constant 0 : i32
    %c0_i32_1 = arith.constant 0 : i32
    return %c0_i32, %c0_i32_0 : i32, i32
  }
  func.func @transform_2(%arg0: i32) -> (i32, i32) {
    %c0_i32 = arith.constant 0 : i32
    %c0_i32_0 = arith.constant 0 : i32
    %c0_i32_1 = arith.constant 0 : i32
    return %c0_i32, %c0_i32_0 : i32, i32
  }
  func.func @transform_3(%arg0: i32) -> (i32, i32) {
    %c0_i32 = arith.constant 0 : i32
    %c0_i32_0 = arith.constant 0 : i32
    return %arg0, %c0_i32 : i32, i32
  }
}

</mosaic_0001>

<llo_original>
// kernel: tpu_custom_call.1
$region0: #{tpu_custom_call.1}
  #allocation0 [shape = 'u32[]', space=smem, size = 0x4, offset = 0x4, fixed_abs, tag = 'smem constant byte address 0x4 - core index']
  #allocation1 [shape = 'u32[72,128]{1,0:T(1,128)}', space=vmem, size = 0x9000, scoped, tag = 'internal scratch']
  %s0 = inlined_call_operand.vmem [shape: f32[16,128], index: 0, kind: input, shape index: {}]
  %s1 = inlined_call_operand.hbm [shape: f32[16,24], index: 1, kind: input, shape index: {}]
  %s2 = inlined_call_operand.vmem [shape: f32[16,1], index: 2, kind: input, shape index: {}]
  %s3 = inlined_call_operand.hbm [shape: f32[32,256], index: 3, kind: output, shape index: {}]
  %s4 = sld [smem:[#allocation0]]
  $region49: #{tpu_custom_call.1} parent=0
    _
  %s6 = ssub.s32 1, %s4
  %s7 = scalar_select 0, %s6, %s4
  $region1: #{tpu_custom_call.1} parent=0
    #allocation2 [shape = 'u8[8192]{0}', space=vmem, size = 0x2000, scoped, tag = 'input window, operand 1, single buffered']
    #allocation3 [shape = 's32[2]{0}', space=sflag, size = 0x8, scoped, tag = 'scoped memory for tpu_custom_call.1']
    #allocation4 [shape = 's32[2]{0}', space=sflag, size = 0x8, scoped, tag = 'scoped memory for tpu_custom_call.1']
    #allocation5 [shape = 'u8[32768]{0}', space=vmem, size = 0x8000, scoped, tag = 'output window, operand 0']
    %8 = vsyncpa [#allocation3], 0
    %9 = vsyncpa [#allocation4], 0
    %s10 = scalar_lea.sflag [#allocation4], 1
    %11 = vsyncpa %s10, 0
    loop: start=0, step=1, limit=4
    $region2: #{tpu_custom_call.1} parent=1 // loop_pre_header
      _
    $region3: #{tpu_custom_call.1} parent=1 // loop_header
      %s13 = sphi 0, %s17
      %p14 = scmp.ge.s32.totalorder %s13, 4
      %s23 = sphi 0, %s25
      %s26 = sphi 0, %s23
      %s27 = sphi 0, %s26
      %s43 = sphi 0, %s27
      %s47 = sphi 0, %s47
      %s49 = sphi 0, %s47
      %s50 = sphi 0, %s49
      %s64 = sphi 0, %s50
      %s68 = sphi 0, %s68
      %s70 = sphi 0, %s68
      %s71 = sphi 0, %s70
      %s85 = sphi 0, %s71
      %s91 = sphi 0, %s93
      %s94 = sphi 0, %s91
      %s95 = sphi 0, %s94
      %s111 = sphi 0, %s95
    $region4: #{tpu_custom_call.1} parent=1 // loop_header_branch
      %16 = sbr.rel (%p14) target = $region8
    $region5: #{tpu_custom_call.1} parent=1 // loop_body
      %s18 = ssub.s32 %s13, 1
      %s19 = ssub.s32 %s13, 2
      %s20 = sadd.s32 %s13, 1
      %s21 = ssub.s32 %s13, %s20
      %p22 = scmp.eq.s32.totalorder %s21, 0
      %s24 = sadd.s32 %s23, 1
      %s25 = scalar_select %p22, %s23, %s24
      %p28 = pneg %p22
      %p29 = scmp.eq.s32.totalorder %s13, 1
      %p30 = por %p28, %p29
      %p31 = scmp.ne.s32.totalorder %s23, %s26
      %p32 = scmp.eq.s32.totalorder %s13, 0
      %p33 = por %p31, %p32
      %p34 = scmp.ne.s32.totalorder %s23, %s26
      %p35 = scmp.eq.s32.totalorder %s18, 1
      %p36 = por %p34, %p35
      %p37 = scmp.ne.s32.totalorder %s26, %s27
      %p38 = scmp.eq.s32.totalorder %s18, 0
      %p39 = por %p37, %p38
      %p40 = scmp.ne.s32.totalorder %s26, %s27
      %p41 = scmp.eq.s32.totalorder %s19, 1
      %p42 = por %p40, %p41
      %p44 = scmp.ne.s32.totalorder %s27, %s43
      %p45 = scmp.eq.s32.totalorder %s19, 0
      %p46 = por %p44, %p45
      %s48 = sadd.s32 %s47, 1
      %p51 = scmp.eq.s32.totalorder %s13, 1
      %p52 = scmp.ne.s32.totalorder %s47, %s49
      %p53 = scmp.eq.s32.totalorder %s13, 0
      %p54 = por %p52, %p53
      %p55 = scmp.ne.s32.totalorder %s47, %s49
      %p56 = scmp.eq.s32.totalorder %s18, 1
      %p57 = por %p55, %p56
      %p58 = scmp.ne.s32.totalorder %s49, %s50
      %p59 = scmp.eq.s32.totalorder %s18, 0
      %p60 = por %p58, %p59
      %p61 = scmp.ne.s32.totalorder %s49, %s50
      %p62 = scmp.eq.s32.totalorder %s19, 1
      %p63 = por %p61, %p62
      %p65 = scmp.ne.s32.totalorder %s50, %s64
      %p66 = scmp.eq.s32.totalorder %s19, 0
      %p67 = por %p65, %p66
      %s69 = sadd.s32 %s68, 1
      %p72 = scmp.eq.s32.totalorder %s13, 1
      %p73 = scmp.ne.s32.totalorder %s68, %s70
      %p74 = scmp.eq.s32.totalorder %s13, 0
      %p75 = por %p73, %p74
      %p76 = scmp.ne.s32.totalorder %s68, %s70
      %p77 = scmp.eq.s32.totalorder %s18, 1
      %p78 = por %p76, %p77
      %p79 = scmp.ne.s32.totalorder %s70, %s71
      %p80 = scmp.eq.s32.totalorder %s18, 0
      %p81 = por %p79, %p80
      %p82 = scmp.ne.s32.totalorder %s70, %s71
      %p83 = scmp.eq.s32.totalorder %s19, 1
      %p84 = por %p82, %p83
      %p86 = scmp.ne.s32.totalorder %s71, %s85
      %p87 = scmp.eq.s32.totalorder %s19, 0
      %p88 = por %p86, %p87
      %s89 = ssub.s32 %s13, %s20
      %p90 = scmp.eq.s32.totalorder %s89, 0
      %s92 = sadd.s32 %s91, 1
      %s93 = scalar_select %p90, %s91, %s92
      %p96 = pneg %p90
      %p97 = scmp.eq.s32.totalorder %s13, 1
      %p98 = por %p96, %p97
      %p99 = scmp.ne.s32.totalorder %s91, %s94
      %p100 = scmp.eq.s32.totalorder %s13, 0
      %p101 = por %p99, %p100
      %p102 = scmp.ne.s32.totalorder %s91, %s94
      %p103 = scmp.eq.s32.totalorder %s18, 1
      %p104 = por %p102, %p103
      %p105 = scmp.ne.s32.totalorder %s94, %s95
      %p106 = scmp.eq.s32.totalorder %s18, 0
      %p107 = por %p105, %p106
      %p108 = scmp.ne.s32.totalorder %s94, %s95
      %p109 = scmp.eq.s32.totalorder %s19, 1
      %p110 = por %p108, %p109
      %p112 = scmp.ne.s32.totalorder %s95, %s111
      %p113 = scmp.eq.s32.totalorder %s19, 0
      %p114 = por %p112, %p113
      %p115 = scmp.le.s32.totalorder 1, %s13
      %p116 = scmp.lt.s32.totalorder %s13, 3
      %p117 = pnand %p115, %p116
      %p118 = pneg %p117
      // Predicated region
      $region9: #{tpu_custom_call.1} parent=5 // pred_check
        _
      $region10: #{tpu_custom_call.1} parent=5 // pred_check_branch
        %120 = sbr.rel (%p117) target = $region12
      $region11: #{tpu_custom_call.1} parent=5 // pred_region
        %s121 = ssub.s32 %s13, 1
        // Predicated region
        $region13: #{tpu_custom_call.1} parent=11 // pred_check
          %p122 = pneg %p60
        $region14: #{tpu_custom_call.1} parent=11 // pred_check_branch
          %124 = sbr.rel (%p122) target = $region16
        $region15: #{tpu_custom_call.1} parent=11 // pred_region
          %126 = vsyncadd [#allocation3], 0
          %s127 = sshll.u32 %s1, 4
          %s128 = int_to_ptr.hbm [resolvable:$true] %s127
          %s129 = sshll.u32 [#allocation2], 4
          %s130 = int_to_ptr.vmem [resolvable:$true] %s129
          %135 = dma.hbm_to_vmem [thread:$0]  %s128, 256, %s130, [#allocation3], 128, 128, 8
        $region16: #{tpu_custom_call.1} parent=11 // pred_fallthru
          _
        // Predicated region
        $region17: #{tpu_custom_call.1} parent=11 // pred_check
          %p136 = pneg %p81
        $region18: #{tpu_custom_call.1} parent=11 // pred_check_branch
          %138 = sbr.rel (%p136) target = $region20
        $region19: #{tpu_custom_call.1} parent=11 // pred_region
          _
        $region20: #{tpu_custom_call.1} parent=11 // pred_fallthru
          _
      $region12: #{tpu_custom_call.1} parent=5 // pred_fallthru
        _
      %p139 = scmp.lt.s32.totalorder %s13, 2
      // Predicated region
      $region21: #{tpu_custom_call.1} parent=5 // pred_check
        %p140 = pneg %p139
      $region22: #{tpu_custom_call.1} parent=5 // pred_check_branch
        %142 = sbr.rel (%p140) target = $region24
      $region23: #{tpu_custom_call.1} parent=5 // pred_region
        // Predicated region
        $region25: #{tpu_custom_call.1} parent=23 // pred_check
          %p143 = pneg %p33
        $region26: #{tpu_custom_call.1} parent=23 // pred_check_branch
          %145 = sbr.rel (%p143) target = $region28
        $region27: #{tpu_custom_call.1} parent=23 // pred_region
          %p146 = scmp.lt.s32.totalorder %s13, 1
          %s147 = scalar_select %p146, %s13, 1
          %s148 = smul.addr %s147, 8
          %s149 = scalar_lea.vmem %s0, %s148
        $region28: #{tpu_custom_call.1} parent=23 // pred_fallthru
          _
      $region24: #{tpu_custom_call.1} parent=5 // pred_fallthru
        _
      %p150 = scmp.le.s32.totalorder 1, %s13
      %p151 = scmp.lt.s32.totalorder %s13, 3
      %p152 = pnand %p150, %p151
      %p153 = pneg %p152
      // Predicated region
      $region29: #{tpu_custom_call.1} parent=5 // pred_check
        _
      $region30: #{tpu_custom_call.1} parent=5 // pred_check_branch
        %155 = sbr.rel (%p152) target = $region32
      $region31: #{tpu_custom_call.1} parent=5 // pred_region
        %s156 = ssub.s32 %s13, 1
        // Predicated region
        $region33: #{tpu_custom_call.1} parent=31 // pred_check
          %p157 = pneg %p60
        $region34: #{tpu_custom_call.1} parent=31 // pred_check_branch
          %159 = sbr.rel (%p157) target = $region36
        $region35: #{tpu_custom_call.1} parent=31 // pred_region
          %161 = dma.done [#allocation3], 256
        $region36: #{tpu_custom_call.1} parent=31 // pred_fallthru
          _
        %p162 = scmp.lt.s32.totalorder %s18, 1
        %s163 = scalar_select %p162, %s18, 1
        %s164 = smul.addr %s163, 8
        %s165 = scalar_lea.vmem %s0, %s164
        %p166 = pneg %p39
        %p167 = pneg %p36
        %p168 = pneg %p60
        %p169 = pneg %p57
        %p170 = pneg %p81
        %p171 = pneg %p78
        %p172 = pneg %p107
        %p173 = pneg %p104
        %s174 = sand.u32 %s94, 1
        %s175 = scalar_lea.sflag [#allocation4], %s174
        %s176 = sand.u32 %s94, 1
        %s177 = smul.addr %s176, 32
        %s178 = scalar_lea.vmem [#allocation5], %s177
        %p179 = scmp.lt.s32.totalorder %s18, 1
        %s180 = scalar_select %p179, %s18, 1
        %s181 = smul.addr %s180, 8
        %s182 = scalar_lea.vmem %s0, %s181
        %s183 = smul.u32 2, %s18
        %v184 = vld [vmem:[%s182] sm:$0xff]
        %v185 = vlaneseq
        %v186 = vshrl.u32 %v185, 7
        %v187 = vadd.s32 %v186, 8
        %v188 = vadd.s32 %v186, 16
        %v189 = vadd.s32 %v186, 24
        %v190 = vadd.s32 %v186, 32
        %v191 = vadd.s32 %v186, 40
        %v192 = vadd.s32 %v186, 48
        %v193 = vadd.s32 %v186, 56
        %v194 = vadd.s32 %v186, 64
        %v195 = vadd.s32 %v186, 72
        %v196 = vadd.s32 %v186, 80
        %v197 = vadd.s32 %v186, 88
        %v198 = vadd.s32 %v186, 96
        %v199 = vadd.s32 %v186, 104
        %v200 = vadd.s32 %v186, 112
        %v201 = vadd.s32 %v186, 120
        %v202 = vlaneseq
        %v203 = vand.u32 %v202, 127
        %v204 = vadd.s32 %v203, 128
        %v205 = vmul.u32 %v186, 2
        %v206 = vmul.u32 %v187, 2
        %v207 = vmul.u32 %v188, 2
        %v208 = vmul.u32 %v189, 2
        %v209 = vmul.u32 %v190, 2
        %v210 = vmul.u32 %v191, 2
        %v211 = vmul.u32 %v192, 2
        %v212 = vmul.u32 %v193, 2
        %v213 = vmul.u32 %v194, 2
        %v214 = vmul.u32 %v195, 2
        %v215 = vmul.u32 %v196, 2
        %v216 = vmul.u32 %v197, 2
        %v217 = vmul.u32 %v198, 2
        %v218 = vmul.u32 %v199, 2
        %v219 = vmul.u32 %v200, 2
        %v220 = vmul.u32 %v201, 2
        %v221 = vadd.s32 %v205, 1
        %v222 = vadd.s32 %v206, 1
        %v223 = vadd.s32 %v207, 1
        %v224 = vadd.s32 %v208, 1
        %v225 = vadd.s32 %v209, 1
        %v226 = vadd.s32 %v210, 1
        %v227 = vadd.s32 %v211, 1
        %v228 = vadd.s32 %v212, 1
        %v229 = vadd.s32 %v213, 1
        %v230 = vadd.s32 %v214, 1
        %v231 = vadd.s32 %v215, 1
        %v232 = vadd.s32 %v216, 1
        %v233 = vadd.s32 %v217, 1
        %v234 = vadd.s32 %v218, 1
        %v235 = vadd.s32 %v219, 1
        %v236 = vadd.s32 %v220, 1
        %vm237 = vcmp.eq.s32.totalorder %v203, %v221
        %vm238 = vcmp.eq.s32.totalorder %v204, %v221
        %vm239 = vcmp.eq.s32.totalorder %v203, %v222
        %vm240 = vcmp.eq.s32.totalorder %v204, %v222
        %vm241 = vcmp.eq.s32.totalorder %v203, %v223
        %vm242 = vcmp.eq.s32.totalorder %v204, %v223
        %vm243 = vcmp.eq.s32.totalorder %v203, %v224
        %vm244 = vcmp.eq.s32.totalorder %v204, %v224
        %vm245 = vcmp.eq.s32.totalorder %v203, %v225
        %vm246 = vcmp.eq.s32.totalorder %v204, %v225
        %vm247 = vcmp.eq.s32.totalorder %v203, %v226
        %vm248 = vcmp.eq.s32.totalorder %v204, %v226
        %vm249 = vcmp.eq.s32.totalorder %v203, %v227
        %vm250 = vcmp.eq.s32.totalorder %v204, %v227
        %vm251 = vcmp.eq.s32.totalorder %v203, %v228
        %vm252 = vcmp.eq.s32.totalorder %v204, %v228
        %vm253 = vcmp.eq.s32.totalorder %v203, %v229
        %vm254 = vcmp.eq.s32.totalorder %v204, %v229
        %vm255 = vcmp.eq.s32.totalorder %v203, %v230
        %vm256 = vcmp.eq.s32.totalorder %v204, %v230
        %vm257 = vcmp.eq.s32.totalorder %v203, %v231
        %vm258 = vcmp.eq.s32.totalorder %v204, %v231
        %vm259 = vcmp.eq.s32.totalorder %v203, %v232
        %vm260 = vcmp.eq.s32.totalorder %v204, %v232
        %vm261 = vcmp.eq.s32.totalorder %v203, %v233
        %vm262 = vcmp.eq.s32.totalorder %v204, %v233
        %vm263 = vcmp.eq.s32.totalorder %v203, %v234
        %vm264 = vcmp.eq.s32.totalorder %v204, %v234
        %vm265 = vcmp.eq.s32.totalorder %v203, %v235
        %vm266 = vcmp.eq.s32.totalorder %v204, %v235
        %vm267 = vcmp.eq.s32.totalorder %v203, %v236
        %vm268 = vcmp.eq.s32.totalorder %v204, %v236
        %v269 = vsel %vm237, 1.0, 0.0
        %v270 = vsel %vm238, 1.0, 0.0
        %v271 = vsel %vm239, 1.0, 0.0
        %v272 = vsel %vm240, 1.0, 0.0
        %v273 = vsel %vm241, 1.0, 0.0
        %v274 = vsel %vm242, 1.0, 0.0
        %v275 = vsel %vm243, 1.0, 0.0
        %v276 = vsel %vm244, 1.0, 0.0
        %v277 = vsel %vm245, 1.0, 0.0
        %v278 = vsel %vm246, 1.0, 0.0
        %v279 = vsel %vm247, 1.0, 0.0
        %v280 = vsel %vm248, 1.0, 0.0
        %v281 = vsel %vm249, 1.0, 0.0
        %v282 = vsel %vm250, 1.0, 0.0
        %v283 = vsel %vm251, 1.0, 0.0
        %v284 = vsel %vm252, 1.0, 0.0
        %v285 = vsel %vm253, 1.0, 0.0
        %v286 = vsel %vm254, 1.0, 0.0
        %v287 = vsel %vm255, 1.0, 0.0
        %v288 = vsel %vm256, 1.0, 0.0
        %v289 = vsel %vm257, 1.0, 0.0
        %v290 = vsel %vm258, 1.0, 0.0
        %v291 = vsel %vm259, 1.0, 0.0
        %v292 = vsel %vm260, 1.0, 0.0
        %v293 = vsel %vm261, 1.0, 0.0
        %v294 = vsel %vm262, 1.0, 0.0
        %v295 = vsel %vm263, 1.0, 0.0
        %v296 = vsel %vm264, 1.0, 0.0
        %v297 = vsel %vm265, 1.0, 0.0
        %v298 = vsel %vm266, 1.0, 0.0
        %v299 = vsel %vm267, 1.0, 0.0
        %v300 = vsel %vm268, 1.0, 0.0
        %301 = vmatpush.msra.mxu0 %v299
        %302 = vmatpush.msra.mxu0 %v297
        %303 = vmatpush.msra.mxu0 %v295
        %304 = vmatpush.msra.mxu0 %v293
        %305 = vmatpush.msra.mxu0 %v291
        %306 = vmatpush.msra.mxu0 %v289
        %307 = vmatpush.msra.mxu0 %v287
        %308 = vmatpush.msra.mxu0 %v285
        %309 = vmatpush.msra.mxu0 %v283
        %310 = vmatpush.msra.mxu0 %v281
        %311 = vmatpush.msra.mxu0 %v279
        %312 = vmatpush.msra.mxu0 %v277
        %313 = vmatpush.msra.mxu0 %v275
        %314 = vmatpush.msra.mxu0 %v273
        %315 = vmatpush.msra.mxu0 %v271
        %316 = vmatpush.msra.mxu0 %v269
        %317 = vmatmul.f32.gmra.mxu0 %v184
        %v318 = vpop.f32.mrf.mxu0
        %v319 = vadd.f32 0.0, %v318
        %320 = vdwg.mxu0
        %321 = vmatpush.msra.mxu0 %v300
        %322 = vmatpush.msra.mxu0 %v298
        %323 = vmatpush.msra.mxu0 %v296
        %324 = vmatpush.msra.mxu0 %v294
        %325 = vmatpush.msra.mxu0 %v292
        %326 = vmatpush.msra.mxu0 %v290
        %327 = vmatpush.msra.mxu0 %v288
        %328 = vmatpush.msra.mxu0 %v286
        %329 = vmatpush.msra.mxu0 %v284
        %330 = vmatpush.msra.mxu0 %v282
        %331 = vmatpush.msra.mxu0 %v280
        %332 = vmatpush.msra.mxu0 %v278
        %333 = vmatpush.msra.mxu0 %v276
        %334 = vmatpush.msra.mxu0 %v274
        %335 = vmatpush.msra.mxu0 %v272
        %336 = vmatpush.msra.mxu0 %v270
        %337 = vmatmul.f32.gmra.mxu0 %v184
        %v338 = vpop.f32.mrf.mxu0
        %v339 = vadd.f32 0.0, %v338
        %340 = vdwg.mxu0
        %341 = vrot.lane.b32.xlu0 %v319, 1
        %v342 = vpop.permute.xlu0 %341
        %343 = vrot.lane.b32.xlu0 %v339, 1
        %v344 = vpop.permute.xlu0 %343
        %vm345 = vcmp.lt.s32.totalorder %v203, 1
        %v346 = vsel %vm345, %v342, %v344
        %v347 = vsel %vm345, %v344, %v342
        %348 = vrot.lane.b32.xlu0 %v319, 127
        %v349 = vpop.permute.xlu0 %348
        %350 = vrot.lane.b32.xlu0 %v339, 127
        %v351 = vpop.permute.xlu0 %350
        %vm352 = vcmp.lt.s32.totalorder %v203, 127
        %v353 = vsel %vm352, %v349, %v351
        %v354 = vsel %vm352, %v351, %v349
        %v355 = vld [vmem:[#allocation2] sm:$0xff]
        %v356 = vld [vmem:[#allocation2 + $0x8] sm:$0xff]
        %v357 = vld [vmem:[%s2] sm:$0xff]
        %v358 = vld [vmem:[%s2 + $0x8] sm:$0xff]
        %360 = vset.pattern.permute.xlu0 0
        %361 = vperm.xlu0 %360, %v357
        %v362 = vpop.permute.xlu0 %361
        %365 = vset.pattern.permute.xlu0 0
        %366 = vperm.xlu0 %365, %v358
        %v367 = vpop.permute.xlu0 %366
        %vm369 = vcmask 195584
        %v371 = vsel %vm369, %v355, 0
        %v374 = vsel %vm369, %v356, 0
        %376 = vmatpush.msra.mxu0 0.0
        %377 = vmatpush.msra.mxu0 0.0
        %378 = vmatpush.msra.mxu0 0.0
        %379 = vmatpush.msra.mxu0 0.0
        %380 = vmatpush.msra.mxu0 0.0
        %381 = vmatpush.msra.mxu0 0.0
        %382 = vmatpush.msra.mxu0 0.0
        %383 = vmatpush.msra.mxu0 0.0
        %384 = vmatpush.msra.mxu0 0.0
        %385 = vmatpush.msra.mxu0 0.0
        %386 = vmatpush.msra.mxu0 0.0
        %387 = vmatpush.msra.mxu0 0.0
        %388 = vmatpush.msra.mxu0 0.0
        %389 = vmatpush.msra.mxu0 %v353
        %390 = vmatpush.msra.mxu0 %v319
        %391 = vmatpush.msra.mxu0 %v347
        %392 = vmatmul.f32.gmra.mxu0 %v371
        %v393 = vpop.f32.mrf.mxu0
        %v394 = vadd.f32 %v362, %v393
        %395 = vmatmul.f32.gmra.mxu0 %v374
        %v396 = vpop.f32.mrf.mxu0
        %v397 = vadd.f32 %v367, %v396
        %398 = vdwg.mxu0
        %399 = vmatpush.msra.mxu0 0.0
        %400 = vmatpush.msra.mxu0 0.0
        %401 = vmatpush.msra.mxu0 0.0
        %402 = vmatpush.msra.mxu0 0.0
        %403 = vmatpush.msra.mxu0 0.0
        %404 = vmatpush.msra.mxu0 0.0
        %405 = vmatpush.msra.mxu0 0.0
        %406 = vmatpush.msra.mxu0 0.0
        %407 = vmatpush.msra.mxu0 0.0
        %408 = vmatpush.msra.mxu0 0.0
        %409 = vmatpush.msra.mxu0 0.0
        %410 = vmatpush.msra.mxu0 0.0
        %411 = vmatpush.msra.mxu0 0.0
        %412 = vmatpush.msra.mxu0 %v354
        %413 = vmatpush.msra.mxu0 %v339
        %414 = vmatpush.msra.mxu0 %v346
        %415 = vmatmul.f32.gmra.mxu0 %v371
        %v416 = vpop.f32.mrf.mxu0
        %v417 = vadd.f32 %v362, %v416
        %418 = vmatmul.f32.gmra.mxu0 %v374
        %v419 = vpop.f32.mrf.mxu0
        %v420 = vadd.f32 %v367, %v419
        %421 = vdwg.mxu0
        %422 = vst [vmem:[%s178] sm:$0xff] %v394
        %423 = vst [vmem:[%s178 + $0x8] sm:$0xff] %v417
        %424 = vst [vmem:[%s178 + $0x10] sm:$0xff] %v397
        %425 = vst [vmem:[%s178 + $0x18] sm:$0xff] %v420
        %s426 = sand.u32 %s94, 1
        %s427 = scalar_lea.sflag [#allocation4], %s426
        %s428 = sand.u32 %s94, 1
        %s429 = smul.addr %s428, 32
        %s430 = scalar_lea.vmem [#allocation5], %s429
        // Predicated region
        $region37: #{tpu_custom_call.1} parent=31 // pred_check
          %p431 = pneg %p104
        $region38: #{tpu_custom_call.1} parent=31 // pred_check_branch
          %433 = sbr.rel (%p431) target = $region40
        $region39: #{tpu_custom_call.1} parent=31 // pred_region
          %s434 = smul.u32 2, %s18
          %436 = vsyncadd %s427, 0
          %s437 = smul.addr %s434, 2
          %s438 = smul.addr %s437, 8
          %s439 = scalar_lea.hbm %s3, %s438
          %s440 = sshll.u32 %s430, 4
          %s441 = int_to_ptr.vmem [resolvable:$true] %s440
          %s442 = sshll.u32 %s439, 4
          %s443 = int_to_ptr.hbm [resolvable:$true] %s442
          %448 = dma.vmem_to_hbm [thread:$0]  %s441, 512, %s443, %s427, 256, 256, 16
        $region40: #{tpu_custom_call.1} parent=31 // pred_fallthru
          _
      $region32: #{tpu_custom_call.1} parent=5 // pred_fallthru
        _
      %p449 = scmp.le.s32.totalorder 2, %s13
      // Predicated region
      $region41: #{tpu_custom_call.1} parent=5 // pred_check
        %p450 = pneg %p449
      $region42: #{tpu_custom_call.1} parent=5 // pred_check_branch
        %452 = sbr.rel (%p450) target = $region44
      $region43: #{tpu_custom_call.1} parent=5 // pred_region
        %s453 = ssub.s32 %s13, 2
        // Predicated region
        $region45: #{tpu_custom_call.1} parent=43 // pred_check
          %p454 = pneg %p110
        $region46: #{tpu_custom_call.1} parent=43 // pred_check_branch
          %456 = sbr.rel (%p454) target = $region48
        $region47: #{tpu_custom_call.1} parent=43 // pred_region
          %s457 = sand.u32 %s95, 1
          %s458 = scalar_lea.sflag [#allocation4], %s457
          %s459 = sand.u32 %s95, 1
          %s460 = smul.addr %s459, 32
          %s461 = scalar_lea.vmem [#allocation5], %s460
          %463 = dma.done %s458, 512
        $region48: #{tpu_custom_call.1} parent=43 // pred_fallthru
          _
      $region44: #{tpu_custom_call.1} parent=5 // pred_fallthru
        _
    $region6: #{tpu_custom_call.1} parent=1 // loop_footer
      %s17 = sadd.s32 1, %s13
    $region7: #{tpu_custom_call.1} parent=1 // loop_footer_branch
      %12 = sbr.rel target = $region3
    $region8: #{tpu_custom_call.1} parent=1 // loop_exit
      _
    %464 = vsyncpa [#allocation3], 1
    %s465 = scalar_lea.sflag [#allocation3], 1
    %466 = vsyncpa %s465, 1
    %467 = vsyncpa [#allocation4], 1
    %s468 = scalar_lea.sflag [#allocation4], 1
    %469 = vsyncpa %s468, 1

</llo_original>
